<compile_context>
chip_gen: v7x
topology: tpu7x:2x2x1
jax: 0.10.0
libtpu: 0.0.40
codegen_flags: <defaults>
</compile_context>

<pallas_src>
import functools

import jax
import jax.numpy as jnp
from jax import lax
from jax.experimental import pallas as pl
from jax.experimental.pallas import tpu as pltpu

_LANES = 128
_SUBLANES = 8
_CHUNK = _SUBLANES * _LANES          # 1024 elements = one (8, 128) vreg
_MAX_TILE_ROWS = 8192                # 8192*128*4B = 4 MiB f32 per stream block


def _make_kernel(tile_rows, tiles_per_shard, rows_valid, needs_mask):
    """Streaming partial-sum kernel over (tile_rows, 128) blocks."""
    r = tile_rows // _SUBLANES       # tile_rows is always a multiple of 8

    def kernel(x_ref, t_ref, acc_ref):
        c = pl.program_id(0)         # core shard (parallel)
        i = pl.program_id(1)         # tile within shard (arbitrary / reduction)

        @pl.when(i == 0)
        def _():
            acc_ref[...] = jnp.zeros_like(acc_ref)

        x = x_ref[...].astype(jnp.float32)   # cast on-chip, native dtype in HBM
        tf = t_ref[...].astype(jnp.float32)
        # sigmoid(x) = 0.5*tanh(x/2) + 0.5 ; the affine part is reconstructed in
        # the scalar epilogue, so only tanh (one EUP op) runs per element here.
        th = jnp.tanh(0.5 * x)

        def accumulate(th_v, t_v):
            th3 = th_v.reshape(r, _SUBLANES, _LANES)   # layout-preserving split
            t3 = t_v.reshape(r, _SUBLANES, _LANES)
            # Vreg-wise (VPU-only) partial sums into the resident accumulator;
            # the cross-lane reduction is deferred to the wrapper epilogue.
            acc_ref[0] += jnp.sum(th3, axis=0)         # sum tanh(x/2)
            acc_ref[1] += jnp.sum(t3, axis=0)          # sum t
            acc_ref[2] += jnp.sum(th3 * t3, axis=0)    # sum tanh(x/2) * t

        if needs_mask:   # static: traced only when the grid over-covers `rows`
            gt = c * tiles_per_shard + i               # global tile index
            start = gt * tile_rows                     # first row of this tile
            full = start + tile_rows <= rows_valid

            @pl.when(full)                             # interior tiles: no mask
            def _():
                accumulate(th, tf)

            @pl.when(jnp.logical_not(full))            # boundary / OOB tiles
            def _():
                row = lax.broadcasted_iota(jnp.int32, (tile_rows, _LANES), 0)
                valid = row < (rows_valid - start)     # all-False if fully OOB
                accumulate(jnp.where(valid, th, 0.0),
                           jnp.where(valid, tf, 0.0))
        else:
            accumulate(th, tf)

    return kernel


def focal_tversky_loss(inputs, targets, *, alpha, beta, gamma, epsilon=0.001,
                       max_tile_rows=_MAX_TILE_ROWS):
    """Focal Tversky loss matching the PyTorch module's forward()."""
    x = inputs.reshape(-1)     # free reshapes; keep native dtypes
    t = targets.reshape(-1)
    n = x.shape[0]

    n_main = (n // _CHUNK) * _CHUNK      # 1024-aligned prefix handled in-kernel

    sum_p = 0.0
    sum_t = 0.0
    tp = 0.0

    if n_main > 0:
        rows = n_main // _LANES                          # multiple of 8
        x2 = x[:n_main].reshape(rows, _LANES)            # zero-copy if n_main == n
        t2 = t[:n_main].reshape(rows, _LANES)

        tile_rows = max(_SUBLANES, (int(max_tile_rows) // _SUBLANES) * _SUBLANES)
        tile_rows = min(tile_rows, rows)                 # multiple of 8
        num_tiles = -(-rows // tile_rows)

        # Shard the streaming reduction over (up to) two TensorCores.  On v7x
        # the leading "parallel" axis runs one shard per core; on 1-TC chips it
        # just iterates sequentially (same total work, negligible overhead).
        num_shards = 2 if num_tiles >= 2 else 1
        tiles_per_shard = -(-num_tiles // num_shards)
        needs_mask = (num_shards * tiles_per_shard * tile_rows) != rows

        if num_shards * tiles_per_shard > num_tiles:
            # Over-shoot tiles (uneven shard split) are clamped onto the last
            # valid block; their contribution is masked to zero in the kernel.
            def row_block(c, i):
                return (jnp.minimum(c * tiles_per_shard + i, num_tiles - 1), 0)
        else:
            def row_block(c, i):
                return (c * tiles_per_shard + i, 0)

        kernel = _make_kernel(tile_rows, tiles_per_shard, rows, needs_mask)

        acc = pl.pallas_call(
            kernel,
            out_shape=jax.ShapeDtypeStruct(
                (num_shards * 3, _SUBLANES, _LANES), jnp.float32),
            grid_spec=pltpu.PrefetchScalarGridSpec(
                num_scalar_prefetch=0,
                grid=(num_shards, tiles_per_shard),
                in_specs=[
                    pl.BlockSpec((tile_rows, _LANES), row_block),
                    pl.BlockSpec((tile_rows, _LANES), row_block),
                ],
                # one lane-dense resident accumulator per core shard
                out_specs=pl.BlockSpec((3, _SUBLANES, _LANES),
                                       lambda c, i: (c, 0, 0)),
            ),
            compiler_params=pltpu.CompilerParams(
                dimension_semantics=("parallel", "arbitrary"),
                vmem_limit_bytes=40 * 1024 * 1024),
        )(x2, t2)

        # Cross-lane / cross-core reduction + sigmoid affine reconstruction.
        sums = jnp.sum(acc.reshape(num_shards, 3, _SUBLANES, _LANES),
                       axis=(0, 2, 3))                   # (3,)
        s_th, s_t, s_tht = sums[0], sums[1], sums[2]
        sum_p = 0.5 * s_th + 0.5 * n_main                # sum sigmoid(x)
        sum_t = s_t                                      # sum t
        tp = 0.5 * s_tht + 0.5 * s_t                     # sum sigmoid(x) * t

    if n_main != n:
        # <1024-element ragged tail reduced with plain jnp in the wrapper
        # (replaces the previous full-tensor jnp.pad copy).
        # TODO(synk): fully zero-copy ragged handling via manual DMA if the
        # non-aligned prefix slice ever shows up as a copy in profiles.
        x_tail = x[n_main:].astype(jnp.float32)
        t_tail = t[n_main:].astype(jnp.float32)
        p_tail = jax.nn.sigmoid(x_tail)
        sum_p = sum_p + jnp.sum(p_tail)
        sum_t = sum_t + jnp.sum(t_tail)
        tp = tp + jnp.sum(p_tail * t_tail)

    fp = sum_p - tp                                      # sum((1 - t) * p)
    fn = sum_t - tp                                      # sum(t * (1 - p))
    tversky = (tp + epsilon) / (tp + alpha * fp + beta * fn + epsilon)
    return (1.0 - tversky) ** gamma


def _reference(inputs, targets, alpha, beta, gamma, epsilon=0.001):
    p = jax.nn.sigmoid(inputs.reshape(-1).astype(jnp.float32))
    t = targets.reshape(-1).astype(jnp.float32)
    tp = jnp.sum(p * t)
    fp = jnp.sum((1.0 - t) * p)
    fn = jnp.sum(t * (1.0 - p))
    tversky = (tp + epsilon) / (tp + alpha * fp + beta * fn + epsilon)
    return (1.0 - tversky) ** gamma


if __name__ == "__main__":
    alpha, beta, gamma = 0.3, 0.7, 1.5
    loss_fn = jax.jit(functools.partial(
        focal_tversky_loss, alpha=alpha, beta=beta, gamma=gamma))

    key = jax.random.PRNGKey(0)
    k1, k2, k3, k4, k5, k6 = jax.random.split(key, 6)

    # Case 1: NCHW logits/targets, numel multiple of 1024 -> zero-copy,
    # single-tile, unmasked path.
    inputs = jax.random.normal(k1, (2, 4, 16, 16), dtype=jnp.float32)
    targets = (jax.random.uniform(k2, (2, 4, 16, 16)) > 0.7).astype(jnp.float32)
    loss = jax.block_until_ready(loss_fn(inputs, targets))
    ref = _reference(inputs, targets, alpha, beta, gamma)
    assert jnp.allclose(loss, ref, rtol=1e-4, atol=1e-6), (loss, ref)

    # Case 2: ragged size -> aligned-prefix kernel + jnp tail (no pad copy).
    inputs2 = jax.random.normal(k3, (2, 3, 15, 17), dtype=jnp.float32)
    targets2 = (jax.random.uniform(k4, (2, 3, 15, 17)) > 0.7).astype(jnp.float32)
    loss2 = jax.block_until_ready(loss_fn(inputs2, targets2))
    ref2 = _reference(inputs2, targets2, alpha, beta, gamma)
    assert jnp.allclose(loss2, ref2, rtol=1e-4, atol=1e-6), (loss2, ref2)

    # Case 3: small data but tiny tiles -> exercises the multi-tile,
    # dual-shard, clamped-overshoot and masked-last-tile paths.
    loss_fn_tiny_tiles = jax.jit(functools.partial(
        focal_tversky_loss, alpha=alpha, beta=beta, gamma=gamma,
        max_tile_rows=16))
    inputs3 = jax.random.normal(k5, (2, 4, 27, 28), dtype=jnp.float32)
    targets3 = (jax.random.uniform(k6, (2, 4, 27, 28)) > 0.7).astype(jnp.float32)
    loss3 = jax.block_until_ready(loss_fn_tiny_tiles(inputs3, targets3))
    ref3 = _reference(inputs3, targets3, alpha, beta, gamma)
    assert jnp.allclose(loss3, ref3, rtol=1e-4, atol=1e-6), (loss3, ref3)

    print("KERNEL_OK")
</pallas_src>

<mosaic_0001>
module attributes {stable_mosaic.version = 11 : i64} {
  func.func @kernel(%arg0: i32, %arg1: i32, %arg2: memref<16x128xf32, #tpu.memory_space<vmem>>, %arg3: memref<16x128xf32, #tpu.memory_space<vmem>>, %arg4: memref<3x8x128xf32, #tpu.memory_space<vmem>>) attributes {dimension_semantics = [#tpu.dimension_semantics<parallel>, #tpu.dimension_semantics<arbitrary>], iteration_bounds = array<i64: 1, 1>, scalar_prefetch = 0 : i64, scratch_operands = 0 : i64, tpu.core_type = #tpu.core_type<tc>, window_params = [{transform_indices = @transform_0, window_bounds = array<i64: 16, 128>}, {transform_indices = @transform_1, window_bounds = array<i64: 16, 128>}, {transform_indices = @transform_2, window_bounds = array<i64: 3, 8, 128>}]} {
    %c0_i32 = arith.constant 0 : i32
    %0 = arith.cmpi eq, %arg1, %c0_i32 : i32
    %1 = arith.extui %0 : i1 to i32
    %c0_i32_0 = arith.constant 0 : i32
    %2 = arith.cmpi ne, %1, %c0_i32_0 : i32
    scf.if %2 {
      %cst_23 = arith.constant 0.000000e+00 : f32
      %32 = vector.broadcast %cst_23 : f32 to vector<3x8x128xf32>
      %c0_24 = arith.constant 0 : index
      %c0_25 = arith.constant 0 : index
      %c0_26 = arith.constant 0 : index
      %33 = vector.load %arg4[%c0_24, %c0_25, %c0_26] : memref<3x8x128xf32, #tpu.memory_space<vmem>>, vector<3x8x128xf32>
      tpu.vector_store %arg4[%c0_24, %c0_25, %c0_26], %32 {strides = array<i32>} : memref<3x8x128xf32, #tpu.memory_space<vmem>>, vector<3x8x128xf32>,
    } else {
    }
    %c0 = arith.constant 0 : index
    %c0_1 = arith.constant 0 : index
    %3 = vector.load %arg2[%c0, %c0_1] : memref<16x128xf32, #tpu.memory_space<vmem>>, vector<16x128xf32>
    %c0_2 = arith.constant 0 : index
    %c0_3 = arith.constant 0 : index
    %4 = vector.load %arg3[%c0_2, %c0_3] : memref<16x128xf32, #tpu.memory_space<vmem>>, vector<16x128xf32>
    %cst = arith.constant 5.000000e-01 : f32
    %5 = vector.broadcast %cst : f32 to vector<16x128xf32>
    %6 = arith.mulf %5, %3 : vector<16x128xf32>
    %7 = math.tanh %6 : vector<16x128xf32>
    %8 = vector.shape_cast %7 : vector<16x128xf32> to vector<2x8x128xf32>
    %9 = vector.shape_cast %4 : vector<16x128xf32> to vector<2x8x128xf32>
    %c0_4 = arith.constant 0 : index
    %c0_5 = arith.constant 0 : index
    %c0_6 = arith.constant 0 : index
    %10 = vector.load %arg4[%c0_4, %c0_5, %c0_6] : memref<3x8x128xf32, #tpu.memory_space<vmem>>, vector<1x8x128xf32>
    %11 = vector.shape_cast %10 : vector<1x8x128xf32> to vector<8x128xf32>
    %cst_7 = arith.constant dense<0.000000e+00> : vector<8x128xf32>
    %12 = vector.multi_reduction <add>, %8, %cst_7 [0] : vector<2x8x128xf32> to vector<8x128xf32>
    %13 = arith.addf %11, %12 : vector<8x128xf32>
    %c0_8 = arith.constant 0 : index
    %c0_9 = arith.constant 0 : index
    %c0_10 = arith.constant 0 : index
    %14 = vector.load %arg4[%c0_8, %c0_9, %c0_10] : memref<3x8x128xf32, #tpu.memory_space<vmem>>, vector<1x8x128xf32>
    %15 = vector.shape_cast %14 : vector<1x8x128xf32> to vector<8x128xf32>
    %16 = vector.shape_cast %13 : vector<8x128xf32> to vector<1x8x128xf32>
    tpu.vector_store %arg4[%c0_8, %c0_9, %c0_10], %16 {strides = array<i32>} : memref<3x8x128xf32, #tpu.memory_space<vmem>>, vector<1x8x128xf32>,
    %c1 = arith.constant 1 : index
    %c0_11 = arith.constant 0 : index
    %c0_12 = arith.constant 0 : index
    %17 = vector.load %arg4[%c1, %c0_11, %c0_12] : memref<3x8x128xf32, #tpu.memory_space<vmem>>, vector<1x8x128xf32>
    %18 = vector.shape_cast %17 : vector<1x8x128xf32> to vector<8x128xf32>
    %cst_13 = arith.constant dense<0.000000e+00> : vector<8x128xf32>
    %19 = vector.multi_reduction <add>, %9, %cst_13 [0] : vector<2x8x128xf32> to vector<8x128xf32>
    %20 = arith.addf %18, %19 : vector<8x128xf32>
    %c1_14 = arith.constant 1 : index
    %c0_15 = arith.constant 0 : index
    %c0_16 = arith.constant 0 : index
    %21 = vector.load %arg4[%c1_14, %c0_15, %c0_16] : memref<3x8x128xf32, #tpu.memory_space<vmem>>, vector<1x8x128xf32>
    %22 = vector.shape_cast %21 : vector<1x8x128xf32> to vector<8x128xf32>
    %23 = vector.shape_cast %20 : vector<8x128xf32> to vector<1x8x128xf32>
    tpu.vector_store %arg4[%c1_14, %c0_15, %c0_16], %23 {strides = array<i32>} : memref<3x8x128xf32, #tpu.memory_space<vmem>>, vector<1x8x128xf32>,
    %c2 = arith.constant 2 : index
    %c0_17 = arith.constant 0 : index
    %c0_18 = arith.constant 0 : index
    %24 = vector.load %arg4[%c2, %c0_17, %c0_18] : memref<3x8x128xf32, #tpu.memory_space<vmem>>, vector<1x8x128xf32>
    %25 = vector.shape_cast %24 : vector<1x8x128xf32> to vector<8x128xf32>
    %26 = arith.mulf %8, %9 : vector<2x8x128xf32>
    %cst_19 = arith.constant dense<0.000000e+00> : vector<8x128xf32>
    %27 = vector.multi_reduction <add>, %26, %cst_19 [0] : vector<2x8x128xf32> to vector<8x128xf32>
    %28 = arith.addf %25, %27 : vector<8x128xf32>
    %c2_20 = arith.constant 2 : index
    %c0_21 = arith.constant 0 : index
    %c0_22 = arith.constant 0 : index
    %29 = vector.load %arg4[%c2_20, %c0_21, %c0_22] : memref<3x8x128xf32, #tpu.memory_space<vmem>>, vector<1x8x128xf32>
    %30 = vector.shape_cast %29 : vector<1x8x128xf32> to vector<8x128xf32>
    %31 = vector.shape_cast %28 : vector<8x128xf32> to vector<1x8x128xf32>
    tpu.vector_store %arg4[%c2_20, %c0_21, %c0_22], %31 {strides = array<i32>} : memref<3x8x128xf32, #tpu.memory_space<vmem>>, vector<1x8x128xf32>,
    return
  }
  func.func @transform_0(%arg0: i32, %arg1: i32) -> (i32, i32) {
    %c1_i32 = arith.constant 1 : i32
    %0 = arith.muli %arg0, %c1_i32 : i32
    %1 = arith.addi %0, %arg1 : i32
    %c0_i32 = arith.constant 0 : i32
    %c0_i32_0 = arith.constant 0 : i32
    return %1, %c0_i32 : i32, i32
  }
  func.func @transform_1(%arg0: i32, %arg1: i32) -> (i32, i32) {
    %c1_i32 = arith.constant 1 : i32
    %0 = arith.muli %arg0, %c1_i32 : i32
    %1 = arith.addi %0, %arg1 : i32
    %c0_i32 = arith.constant 0 : i32
    %c0_i32_0 = arith.constant 0 : i32
    return %1, %c0_i32 : i32, i32
  }
  func.func @transform_2(%arg0: i32, %arg1: i32) -> (i32, i32, i32) {
    %c0_i32 = arith.constant 0 : i32
    %c0_i32_0 = arith.constant 0 : i32
    %c0_i32_1 = arith.constant 0 : i32
    return %arg0, %c0_i32, %c0_i32_0 : i32, i32, i32
  }
}

</mosaic_0001>

<llo_original>
// kernel: focal_tversky_loss.1
$region0: #{focal_tversky_loss.1}
  #allocation0 [shape = 'u32[]', space=smem, size = 0x4, offset = 0x4, fixed_abs, tag = 'smem constant byte address 0x4 - core index']
  #allocation1 [shape = 'u32[144,128]{1,0:T(1,128)}', space=vmem, size = 0x12000, scoped, tag = 'internal scratch']
  %s0 = inlined_call_operand.vmem [shape: f32[16,128], index: 0, kind: input, shape index: {}]
  %s1 = inlined_call_operand.vmem [shape: f32[16,128], index: 1, kind: input, shape index: {}]
  %s2 = inlined_call_operand.vmem [shape: f32[3,8,128], index: 2, kind: output, shape index: {}]
  %s3 = sld [smem:[#allocation0]]
  $region22: #{focal_tversky_loss.1} parent=0
    _
  %s5 = ssub.s32 1, %s3
  %s6 = scalar_select 0, %s5, %s3
  // Predicated region
  $region2: #{focal_tversky_loss.1} parent=0 // pred_check
    _
  $region3: #{focal_tversky_loss.1} parent=0 // pred_check_branch
    %8 = sbr.rel (0) target = $region5
  $region4: #{focal_tversky_loss.1} parent=0 // pred_region
    %s9 = sadd.s32 0, 0
    %s10 = smul.u32 2, %s9
    %p11 = scmp.lt.s32.totalorder %s10, 1
    %s12 = scalar_select %p11, %s10, 1
    %s13 = smul.addr %s12, 8
    %s14 = scalar_lea.vmem %s0, %s13
    %s15 = sadd.s32 0, 0
    %s16 = smul.u32 2, %s15
  $region5: #{focal_tversky_loss.1} parent=0 // pred_fallthru
    _
  // Predicated region
  $region6: #{focal_tversky_loss.1} parent=0 // pred_check
    _
  $region7: #{focal_tversky_loss.1} parent=0 // pred_check_branch
    %18 = sbr.rel (0) target = $region9
  $region8: #{focal_tversky_loss.1} parent=0 // pred_region
    %s19 = sadd.s32 0, 0
    %s20 = smul.u32 2, %s19
    %p21 = scmp.lt.s32.totalorder %s20, 1
    %s22 = scalar_select %p21, %s20, 1
    %s23 = smul.addr %s22, 8
    %s24 = scalar_lea.vmem %s1, %s23
    %s25 = sadd.s32 0, 0
    %s26 = smul.u32 2, %s25
  $region9: #{focal_tversky_loss.1} parent=0 // pred_fallthru
    _
  %s27 = sadd.s32 0, 0
  %s28 = smul.u32 2, %s27
  %p29 = scmp.lt.s32.totalorder %s28, 1
  %s30 = scalar_select %p29, %s28, 1
  %s31 = smul.addr %s30, 8
  %s32 = scalar_lea.vmem %s0, %s31
  %s33 = sadd.s32 0, 0
  %s34 = smul.u32 2, %s33
  %p35 = scmp.lt.s32.totalorder %s34, 1
  %s36 = scalar_select %p35, %s34, 1
  %s37 = smul.addr %s36, 8
  %s38 = scalar_lea.vmem %s1, %s37
  %s39 = sadd.s32 0, 0
  %s40 = smul.u32 2, %s39
  %p41 = scmp.lt.s32.totalorder %s40, 1
  %s42 = scalar_select %p41, %s40, 1
  %s43 = smul.addr %s42, 8
  %s44 = scalar_lea.vmem %s0, %s43
  %s45 = sadd.s32 0, 0
  %s46 = smul.u32 2, %s45
  %s47 = sadd.s32 0, 0
  %s48 = smul.u32 2, %s47
  %p49 = scmp.lt.s32.totalorder %s48, 1
  %s50 = scalar_select %p49, %s48, 1
  %s51 = smul.addr %s50, 8
  %s52 = scalar_lea.vmem %s1, %s51
  %s53 = sadd.s32 0, 0
  %s54 = smul.u32 2, %s53
  %p55 = scmp.eq.s32.totalorder 0, 0
  // Predicated region
  $region10: #{focal_tversky_loss.1} parent=0 // pred_check
    %p56 = pneg %p55
  $region11: #{focal_tversky_loss.1} parent=0 // pred_check_branch
    %58 = sbr.rel (%p56) target = $region13
  $region12: #{focal_tversky_loss.1} parent=0 // pred_region
    %59 = vst [vmem:[%s2] sm:$0xff] 0.0
    %60 = vst [vmem:[%s2 + $0x8] sm:$0xff] 0.0
    %61 = vst [vmem:[%s2 + $0x10] sm:$0xff] 0.0
  $region13: #{focal_tversky_loss.1} parent=0 // pred_fallthru
    _
  %v62 = vld [vmem:[%s44] sm:$0xff]
  %v63 = vld [vmem:[%s44 + $0x8] sm:$0xff]
  %v64 = vld [vmem:[%s52] sm:$0xff]
  %v65 = vld [vmem:[%s52 + $0x8] sm:$0xff]
  %v66 = vmul.f32 %v62, 0.5
  %v67 = vmul.f32 %v63, 0.5
  %v68 = vtanh.pop %v66
  %v69 = vtanh.pop %v67
  %v70 = vld [vmem:[%s2] sm:$0xff]
  %v71 = vadd.f32 %v68, %v69
  %v72 = vadd.f32 %v70, %v71
  %73 = vst [vmem:[%s2] sm:$0xff] %v72
  %s74 = scalar_lea.vmem %s2, 8
  %v75 = vld [vmem:[%s74] sm:$0xff]
  %v76 = vadd.f32 %v64, %v65
  %v77 = vadd.f32 %v75, %v76
  %78 = vst [vmem:[%s74] sm:$0xff] %v77
  %s79 = scalar_lea.vmem %s2, 16
  %v80 = vld [vmem:[%s79] sm:$0xff]
  %v81 = vmul.f32 %v68, %v64
  %v82 = vmul.f32 %v69, %v65
  %v83 = vadd.f32 %v81, %v82
  %v84 = vadd.f32 %v80, %v83
  %85 = vst [vmem:[%s79] sm:$0xff] %v84
  // Predicated region
  $region14: #{focal_tversky_loss.1} parent=0 // pred_check
    _
  $region15: #{focal_tversky_loss.1} parent=0 // pred_check_branch
    %87 = sbr.rel (0) target = $region17
  $region16: #{focal_tversky_loss.1} parent=0 // pred_region
    _
  $region17: #{focal_tversky_loss.1} parent=0 // pred_fallthru
    _
  // Predicated region
  $region18: #{focal_tversky_loss.1} parent=0 // pred_check
    _
  $region19: #{focal_tversky_loss.1} parent=0 // pred_check_branch
    %89 = sbr.rel (0) target = $region21
  $region20: #{focal_tversky_loss.1} parent=0 // pred_region
    _
  $region21: #{focal_tversky_loss.1} parent=0 // pred_fallthru
    _

</llo_original>
